<compile_context>
chip_gen: v6e
topology: v6e:2x2x1
jax: 0.10.0
libtpu: 0.0.40
codegen_flags: <defaults>
</compile_context>

<pallas_src>
import jax
import jax.numpy as jnp
from jax.experimental import pallas as pl
from jax.experimental.pallas import tpu as pltpu


def _round_up(a: int, b: int) -> int:
    return (a + b - 1) // b * b


def _divisors(n: int):
    ds = set()
    i = 1
    while i * i <= n:
        if n % i == 0:
            ds.add(i)
            ds.add(n // i)
        i += 1
    return sorted(ds)


def _vmem_capacity_bytes() -> int:
    """Per-core VMEM capacity; conservative (v7x-sized) fallback if unknown."""
    try:
        info = pltpu.get_tpu_info()
        cap = int(getattr(info, "vmem_capacity_bytes", 0) or 0)
        if cap > 0:
            return cap
    except Exception:
        pass
    return 64 * 1024 * 1024


def _choose_hw_tile(hw: int, block_ch: int, itemsize: int, budget_bytes: int) -> int:
    """Largest divisor of hw (preferring 128-multiples) whose double-buffered,
    sublane-padded in+out blocks fit within budget_bytes."""
    gran = max(8, 32 // itemsize)  # sublane granule: 8 f32 / 16 bf16 / 32 int8
    # 2 blocks (in + out) x 2-deep double buffering, each sublane-padded.
    per_spatial_elem = 4 * _round_up(block_ch, gran) * itemsize
    max_t = max(1, budget_bytes // per_spatial_elem)
    if hw <= max_t:
        return hw
    fitting = [d for d in _divisors(hw) if d <= max_t]
    lane_dense = [d for d in fitting if d % 128 == 0]
    if lane_dense:
        return max(lane_dense)
    # TODO(synk): for awkward H*W (no reasonable divisor fits the budget),
    # switch to cdiv tiling over an unflattened view with masked edge tiles.
    return max(fitting)


def _copy_kernel(x_ref, o_ref):
    # The channel shuffle is expressed entirely by the index_maps; the body
    # is a pure (block_ch, T) tile copy.
    o_ref[...] = x_ref[...]


def shuffle_block(x: jax.Array, groups: int) -> jax.Array:
    """Channel shuffle. x: (N, C, H, W) -> (N, C, H, W)."""
    N, C, H, W = x.shape
    g = groups
    assert C % g == 0, "C must be divisible by groups"
    cpg = C // g
    HW = H * W

    if g == 1 or cpg == 1:
        return x  # permutation is the identity

    itemsize = jnp.dtype(x.dtype).itemsize
    gran = max(8, 32 // itemsize)

    # Grid over the smaller channel-split factor; keep the larger one in-block.
    grid_ch = min(g, cpg)
    block_ch = max(g, cpg)

    vmem_cap = _vmem_capacity_bytes()
    tile_budget = int(0.6 * vmem_cap)  # budget for all double-buffered blocks
    T = _choose_hw_tile(HW, block_ch, itemsize, tile_budget)
    num_t = HW // T

    padded_block_bytes = _round_up(block_ch, gran) * T * itemsize
    vmem_needed = 4 * padded_block_bytes  # (in + out) x double-buffer
    vmem_limit = min(int(0.9 * vmem_cap), max(vmem_needed + (4 << 20), 16 << 20))

    if g <= cpg:
        # Grid over c1 in [0, g). Input keeps the (g, cpg, HW) split; the output
        # flattens (g, HW) -> g*HW so its block has no size-1 dim in the last
        # two axes. Output element offset along that axis is c1*HW + t*T, i.e.
        # block index c1*num_t + t.
        x_view = x.reshape(N, g, cpg, HW)
        in_spec = pl.BlockSpec((None, None, cpg, T), lambda n, c, t: (n, c, 0, t))
        out_shape = jax.ShapeDtypeStruct((N, cpg, g * HW), x.dtype)
        out_spec = pl.BlockSpec((None, cpg, T), lambda n, c, t: (n, 0, c * num_t + t))
    else:
        # Grid over c2 in [0, cpg). Output keeps the (cpg, g, HW) split; the
        # input flattens (cpg, HW) -> cpg*HW.
        x_view = x.reshape(N, g, cpg * HW)
        in_spec = pl.BlockSpec((None, g, T), lambda n, c, t: (n, 0, c * num_t + t))
        out_shape = jax.ShapeDtypeStruct((N, cpg, g, HW), x.dtype)
        out_spec = pl.BlockSpec((None, None, g, T), lambda n, c, t: (n, c, 0, t))

    out = pl.pallas_call(
        _copy_kernel,
        out_shape=out_shape,
        grid_spec=pltpu.PrefetchScalarGridSpec(
            num_scalar_prefetch=0,
            grid=(N, grid_ch, num_t),
            in_specs=[in_spec],
            out_specs=out_spec,
        ),
        compiler_params=pltpu.CompilerParams(
            dimension_semantics=("parallel", "parallel", "parallel"),
            vmem_limit_bytes=vmem_limit,
        ),
    )(x_view)

    # Free metadata reshape back to NCHW: the flat per-sample layout written by
    # the kernel is already co*HW + s with co = c2*g + c1.
    return out.reshape(N, C, H, W)


def shuffle_block_ref(x: jax.Array, groups: int) -> jax.Array:
    """Pure-JAX reference matching the PyTorch module exactly."""
    N, C, H, W = x.shape
    g = groups
    return (
        x.reshape(N, g, C // g, H, W)
        .transpose(0, 2, 1, 3, 4)
        .reshape(N, C, H, W)
    )


if __name__ == "__main__":
    key = jax.random.PRNGKey(0)
    N, C, H, W = 2, 4, 16, 16
    groups = 2

    x = jax.random.normal(key, (N, C, H, W), dtype=jnp.float32)

    out = shuffle_block(x, groups)
    out = jax.block_until_ready(out)

    ref = shuffle_block_ref(x, groups)
    assert out.shape == (N, C, H, W)
    assert out.dtype == x.dtype
    assert jnp.array_equal(out, ref), "Pallas channel shuffle mismatch vs reference"

    print("KERNEL_OK")
</pallas_src>

<mosaic_0001>
module attributes {stable_mosaic.version = 11 : i64} {
  func.func @_copy_kernel(%arg0: i32, %arg1: i32, %arg2: i32, %arg3: memref<1x1x2x256xf32, #tpu.memory_space<vmem>>, %arg4: memref<1x2x256xf32, #tpu.memory_space<vmem>>) attributes {dimension_semantics = [#tpu.dimension_semantics<parallel>, #tpu.dimension_semantics<parallel>, #tpu.dimension_semantics<parallel>], iteration_bounds = array<i64: 2, 2, 1>, scalar_prefetch = 0 : i64, scratch_operands = 0 : i64, tpu.core_type = #tpu.core_type<tc>, window_params = [{transform_indices = @transform_0, window_bounds = array<i64: 1, 1, 2, 256>}, {transform_indices = @transform_1, window_bounds = array<i64: 1, 2, 256>}]} {
    %c0 = arith.constant 0 : index
    %c0_0 = arith.constant 0 : index
    %c0_1 = arith.constant 0 : index
    %c0_2 = arith.constant 0 : index
    %0 = vector.load %arg3[%c0, %c0_0, %c0_1, %c0_2] : memref<1x1x2x256xf32, #tpu.memory_space<vmem>>, vector<1x1x2x256xf32>
    %1 = vector.shape_cast %0 : vector<1x1x2x256xf32> to vector<2x256xf32>
    %c0_3 = arith.constant 0 : index
    %c0_4 = arith.constant 0 : index
    %c0_5 = arith.constant 0 : index
    %2 = vector.load %arg4[%c0_3, %c0_4, %c0_5] : memref<1x2x256xf32, #tpu.memory_space<vmem>>, vector<1x2x256xf32>
    %3 = vector.shape_cast %2 : vector<1x2x256xf32> to vector<2x256xf32>
    %4 = vector.shape_cast %1 : vector<2x256xf32> to vector<1x2x256xf32>
    tpu.vector_store %arg4[%c0_3, %c0_4, %c0_5], %4 {strides = array<i32>} : memref<1x2x256xf32, #tpu.memory_space<vmem>>, vector<1x2x256xf32>,
    return
  }
  func.func @transform_0(%arg0: i32, %arg1: i32, %arg2: i32) -> (i32, i32, i32, i32) {
    %c0_i32 = arith.constant 0 : i32
    %c0_i32_0 = arith.constant 0 : i32
    return %arg0, %arg1, %c0_i32, %arg2 : i32, i32, i32, i32
  }
  func.func @transform_1(%arg0: i32, %arg1: i32, %arg2: i32) -> (i32, i32, i32) {
    %c1_i32 = arith.constant 1 : i32
    %0 = arith.muli %arg1, %c1_i32 : i32
    %1 = arith.addi %0, %arg2 : i32
    %c0_i32 = arith.constant 0 : i32
    %c0_i32_0 = arith.constant 0 : i32
    return %arg0, %c0_i32, %1 : i32, i32, i32
  }
}

</mosaic_0001>

<llo_original>
// kernel: tpu_custom_call.1
$region0: #{tpu_custom_call.1}
  #allocation0 [shape = 'u32[]', space=smem, size = 0x4, offset = 0x4, fixed_abs, tag = 'smem constant byte address 0x4 - core index']
  #allocation1 [shape = 'u32[144,128]{1,0:T(1,128)}', space=vmem, size = 0x12000, scoped, tag = 'internal scratch']
  %s0 = inlined_call_operand.hbm [shape: f32[2,2,2,256], index: 0, kind: input, shape index: {}]
  %s1 = inlined_call_operand.hbm [shape: f32[2,2,512], index: 1, kind: output, shape index: {}]
  %s2 = sld [smem:[#allocation0]]
  $region41: #{tpu_custom_call.1} parent=0
    _
  %s4 = ssub.s32 1, %s2
  %s5 = scalar_select 0, %s4, %s2
  $region1: #{tpu_custom_call.1} parent=0
    #allocation2 [shape = 'u8[4096]{0}', space=vmem, size = 0x1000, scoped, tag = 'input window, operand 0']
    #allocation3 [shape = 's32[2]{0}', space=sflag, size = 0x8, scoped, tag = 'scoped memory for tpu_custom_call.1']
    #allocation4 [shape = 's32[2]{0}', space=sflag, size = 0x8, scoped, tag = 'scoped memory for tpu_custom_call.1']
    #allocation5 [shape = 'u8[4096]{0}', space=vmem, size = 0x1000, scoped, tag = 'output window, operand 0']
    %6 = vsyncpa [#allocation3], 0
    %s7 = scalar_lea.sflag [#allocation3], 1
    %8 = vsyncpa %s7, 0
    %9 = vsyncpa [#allocation4], 0
    %s10 = scalar_lea.sflag [#allocation4], 1
    %11 = vsyncpa %s10, 0
    loop: start=0, step=1, limit=6
    $region2: #{tpu_custom_call.1} parent=1 // loop_pre_header
      _
    $region3: #{tpu_custom_call.1} parent=1 // loop_header
      %s13 = sphi 0, %s17
      %p14 = scmp.ge.s32.totalorder %s13, 6
      %s20 = sphi 0, %s39
      %s21 = sphi 0, %s35
      %s22 = sphi 0, %s31
      %s23 = sphi 0, %s20
      %s24 = sphi 0, %s21
      %s25 = sphi 0, %s22
      %s26 = sphi 0, %s23
      %s27 = sphi 0, %s24
      %s28 = sphi 0, %s25
      %s46 = sphi 0, %s48
      %s49 = sphi 0, %s46
      %s50 = sphi 0, %s49
      %s66 = sphi 0, %s50
      %s76 = sphi 0, %s78
      %s79 = sphi 0, %s76
      %s80 = sphi 0, %s79
      %s96 = sphi 0, %s80
    $region4: #{tpu_custom_call.1} parent=1 // loop_header_branch
      %16 = sbr.rel (%p14) target = $region8
    $region5: #{tpu_custom_call.1} parent=1 // loop_body
      %s18 = ssub.s32 %s13, 1
      %s19 = ssub.s32 %s13, 2
      %s29 = sadd.s32 1, %s22
      %p30 = scmp.ge.s32.totalorder %s29, 1
      %s31 = scalar_select %p30, 0, %s29
      %s32 = sadd.s32 1, %s21
      %s33 = scalar_select %p30, %s32, %s21
      %p34 = scmp.ge.s32.totalorder %s33, 2
      %s35 = scalar_select %p34, 0, %s33
      %s36 = sadd.s32 1, %s20
      %s37 = scalar_select %p34, %s36, %s20
      %p38 = scmp.ge.s32.totalorder %s37, 2
      %s39 = scalar_select %p38, 0, %s37
      %s40 = ssub.s32 %s20, %s39
      %s41 = ssub.s32 %s21, %s35
      %s42 = sor.u32 %s40, %s41
      %s43 = ssub.s32 %s22, %s31
      %s44 = sor.u32 %s42, %s43
      %p45 = scmp.eq.s32.totalorder %s44, 0
      %s47 = sadd.s32 %s46, 1
      %s48 = scalar_select %p45, %s46, %s47
      %p51 = pneg %p45
      %p52 = scmp.eq.s32.totalorder %s13, 3
      %p53 = por %p51, %p52
      %p54 = scmp.ne.s32.totalorder %s46, %s49
      %p55 = scmp.eq.s32.totalorder %s13, 0
      %p56 = por %p54, %p55
      %p57 = scmp.ne.s32.totalorder %s46, %s49
      %p58 = scmp.eq.s32.totalorder %s18, 3
      %p59 = por %p57, %p58
      %p60 = scmp.ne.s32.totalorder %s49, %s50
      %p61 = scmp.eq.s32.totalorder %s18, 0
      %p62 = por %p60, %p61
      %p63 = scmp.ne.s32.totalorder %s49, %s50
      %p64 = scmp.eq.s32.totalorder %s19, 3
      %p65 = por %p63, %p64
      %p67 = scmp.ne.s32.totalorder %s50, %s66
      %p68 = scmp.eq.s32.totalorder %s19, 0
      %p69 = por %p67, %p68
      %s70 = sadd.s32 %s21, %s22
      %s71 = sadd.s32 %s35, %s31
      %s72 = ssub.s32 %s20, %s39
      %s73 = ssub.s32 %s70, %s71
      %s74 = sor.u32 %s72, %s73
      %p75 = scmp.eq.s32.totalorder %s74, 0
      %s77 = sadd.s32 %s76, 1
      %s78 = scalar_select %p75, %s76, %s77
      %p81 = pneg %p75
      %p82 = scmp.eq.s32.totalorder %s13, 3
      %p83 = por %p81, %p82
      %p84 = scmp.ne.s32.totalorder %s76, %s79
      %p85 = scmp.eq.s32.totalorder %s13, 0
      %p86 = por %p84, %p85
      %p87 = scmp.ne.s32.totalorder %s76, %s79
      %p88 = scmp.eq.s32.totalorder %s18, 3
      %p89 = por %p87, %p88
      %p90 = scmp.ne.s32.totalorder %s79, %s80
      %p91 = scmp.eq.s32.totalorder %s18, 0
      %p92 = por %p90, %p91
      %p93 = scmp.ne.s32.totalorder %s79, %s80
      %p94 = scmp.eq.s32.totalorder %s19, 3
      %p95 = por %p93, %p94
      %p97 = scmp.ne.s32.totalorder %s80, %s96
      %p98 = scmp.eq.s32.totalorder %s19, 0
      %p99 = por %p97, %p98
      %p100 = scmp.le.s32.totalorder 1, %s13
      %p101 = scmp.lt.s32.totalorder %s13, 5
      %p102 = pnand %p100, %p101
      %p103 = pneg %p102
      // Predicated region
      $region9: #{tpu_custom_call.1} parent=5 // pred_check
        _
      $region10: #{tpu_custom_call.1} parent=5 // pred_check_branch
        %105 = sbr.rel (%p102) target = $region12
      $region11: #{tpu_custom_call.1} parent=5 // pred_region
        %s106 = ssub.s32 %s13, 1
      $region12: #{tpu_custom_call.1} parent=5 // pred_fallthru
        _
      %p107 = scmp.lt.s32.totalorder %s13, 4
      // Predicated region
      $region13: #{tpu_custom_call.1} parent=5 // pred_check
        %p108 = pneg %p107
      $region14: #{tpu_custom_call.1} parent=5 // pred_check_branch
        %110 = sbr.rel (%p108) target = $region16
      $region15: #{tpu_custom_call.1} parent=5 // pred_region
        // Predicated region
        $region17: #{tpu_custom_call.1} parent=15 // pred_check
          %p111 = pneg %p56
        $region18: #{tpu_custom_call.1} parent=15 // pred_check_branch
          %113 = sbr.rel (%p111) target = $region20
        $region19: #{tpu_custom_call.1} parent=15 // pred_region
          %s114 = sand.u32 %s46, 1
          %s115 = scalar_lea.sflag [#allocation3], %s114
          %s116 = sand.u32 %s46, 1
          %s117 = smul.addr %s116, 4
          %s118 = scalar_lea.vmem [#allocation2], %s117
          %s119 = smul.u32 2, %s22
          %s121 = ssub.s32 64, 64
          %122 = vsyncadd %s115, %s121
          %s123 = smul.addr %s21, 2
          %s124 = sadd.s32 %s119, %s123
          %s125 = smul.addr %s20, 4
          %s126 = sadd.s32 %s124, %s125
          %s127 = smul.addr %s126, 32
          %s128 = scalar_lea.hbm %s0, %s127
          %s130 = sshll.u32 %s118, 4
          %s131 = int_to_ptr.vmem [resolvable:$true] %s130
          %133 = dma.hbm_to_vmem [thread:$0]  %s128, 64, %s131, %s115
        $region20: #{tpu_custom_call.1} parent=15 // pred_fallthru
          _
      $region16: #{tpu_custom_call.1} parent=5 // pred_fallthru
        _
      %p134 = scmp.le.s32.totalorder 1, %s13
      %p135 = scmp.lt.s32.totalorder %s13, 5
      %p136 = pnand %p134, %p135
      %p137 = pneg %p136
      // Predicated region
      $region21: #{tpu_custom_call.1} parent=5 // pred_check
        _
      $region22: #{tpu_custom_call.1} parent=5 // pred_check_branch
        %139 = sbr.rel (%p136) target = $region24
      $region23: #{tpu_custom_call.1} parent=5 // pred_region
        %s140 = ssub.s32 %s13, 1
        %s141 = sand.u32 %s49, 1
        %s142 = scalar_lea.sflag [#allocation3], %s141
        %s143 = sand.u32 %s49, 1
        %s144 = smul.addr %s143, 4
        %s145 = scalar_lea.vmem [#allocation2], %s144
        // Predicated region
        $region25: #{tpu_custom_call.1} parent=23 // pred_check
          %p146 = pneg %p62
        $region26: #{tpu_custom_call.1} parent=23 // pred_check_branch
          %148 = sbr.rel (%p146) target = $region28
        $region27: #{tpu_custom_call.1} parent=23 // pred_region
          %149 = dma.done %s142, 64
        $region28: #{tpu_custom_call.1} parent=23 // pred_fallthru
          _
        %s150 = sand.u32 %s49, 1
        %s151 = scalar_lea.sflag [#allocation3], %s150
        %s152 = sand.u32 %s49, 1
        %s153 = smul.addr %s152, 4
        %s154 = scalar_lea.vmem [#allocation2], %s153
        %p155 = pneg %p62
        %p156 = pneg %p59
        %p157 = pneg %p92
        %p158 = pneg %p89
        %s159 = sand.u32 %s79, 1
        %s160 = scalar_lea.sflag [#allocation4], %s159
        %s161 = sand.u32 %s79, 1
        %s162 = smul.addr %s161, 4
        %s163 = scalar_lea.vmem [#allocation5], %s162
        %s164 = smul.u32 2, %s25
        %s165 = sadd.s32 %s24, %s25
        %s166 = smul.u32 2, %s165
        %v167 = vld [vmem:[%s145] sm:$0xf]
        %168 = vst [vmem:[%s163] sm:$0xf] %v167
        %s169 = sand.u32 %s79, 1
        %s170 = scalar_lea.sflag [#allocation4], %s169
        %s171 = sand.u32 %s79, 1
        %s172 = smul.addr %s171, 4
        %s173 = scalar_lea.vmem [#allocation5], %s172
        // Predicated region
        $region29: #{tpu_custom_call.1} parent=23 // pred_check
          %p174 = pneg %p89
        $region30: #{tpu_custom_call.1} parent=23 // pred_check_branch
          %176 = sbr.rel (%p174) target = $region32
        $region31: #{tpu_custom_call.1} parent=23 // pred_region
          %s177 = sadd.s32 %s24, %s25
          %s178 = smul.u32 2, %s177
          %s180 = ssub.s32 64, 64
          %181 = vsyncadd %s170, %s180
          %s182 = smul.addr %s23, 4
          %s183 = sadd.s32 %s178, %s182
          %s184 = smul.addr %s183, 32
          %s185 = scalar_lea.hbm %s1, %s184
          %s187 = sshll.u32 %s173, 4
          %s188 = int_to_ptr.vmem [resolvable:$true] %s187
          %190 = dma.vmem_to_hbm [thread:$0]  %s188, 64, %s185, %s170
        $region32: #{tpu_custom_call.1} parent=23 // pred_fallthru
          _
      $region24: #{tpu_custom_call.1} parent=5 // pred_fallthru
        _
      %p191 = scmp.le.s32.totalorder 2, %s13
      // Predicated region
      $region33: #{tpu_custom_call.1} parent=5 // pred_check
        %p192 = pneg %p191
      $region34: #{tpu_custom_call.1} parent=5 // pred_check_branch
        %194 = sbr.rel (%p192) target = $region36
      $region35: #{tpu_custom_call.1} parent=5 // pred_region
        %s195 = ssub.s32 %s13, 2
        // Predicated region
        $region37: #{tpu_custom_call.1} parent=35 // pred_check
          %p196 = pneg %p95
        $region38: #{tpu_custom_call.1} parent=35 // pred_check_branch
          %198 = sbr.rel (%p196) target = $region40
        $region39: #{tpu_custom_call.1} parent=35 // pred_region
          %s199 = sand.u32 %s80, 1
          %s200 = scalar_lea.sflag [#allocation4], %s199
          %s201 = sand.u32 %s80, 1
          %s202 = smul.addr %s201, 4
          %s203 = scalar_lea.vmem [#allocation5], %s202
          %204 = dma.done %s200, 64
        $region40: #{tpu_custom_call.1} parent=35 // pred_fallthru
          _
      $region36: #{tpu_custom_call.1} parent=5 // pred_fallthru
        _
    $region6: #{tpu_custom_call.1} parent=1 // loop_footer
      %s17 = sadd.s32 1, %s13
    $region7: #{tpu_custom_call.1} parent=1 // loop_footer_branch
      %12 = sbr.rel target = $region3
    $region8: #{tpu_custom_call.1} parent=1 // loop_exit
      _
    %205 = vsyncpa [#allocation3], 1
    %s206 = scalar_lea.sflag [#allocation3], 1
    %207 = vsyncpa %s206, 1
    %208 = vsyncpa [#allocation4], 1
    %s209 = scalar_lea.sflag [#allocation4], 1
    %210 = vsyncpa %s209, 1

</llo_original>
